<compile_context>
chip_gen: v6e
topology: v6e:2x2x1
jax: 0.10.0
libtpu: 0.0.40
codegen_flags: <defaults>
</compile_context>

<pallas_src>
import functools

import jax
import jax.numpy as jnp
from jax import lax
from jax.experimental import pallas as pl
from jax.experimental.pallas import tpu as pltpu


def _channel_shift(x, s, axis):
    """out[.., i, ..] = x[.., i - s, ..] along `axis`, zero outside [0, C).  Static s."""
    C = x.shape[axis]
    if axis == x.ndim - 1:
        # Channels on lanes: XLU lane rotation (free slot vs VPU) + one compare/select.
        lane = lax.broadcasted_iota(jnp.int32, (1, C), 1)
        rolled = pltpu.roll(x, shift=s % C, axis=axis)
        mask = (lane >= s) if s > 0 else (lane < C + s)
        return jnp.where(mask, rolled, jnp.float32(0.0))
    # Channels on sublanes (transposed layout): static slice + zero pad.
    zeros = jnp.zeros((abs(s), x.shape[1]), x.dtype)
    if s > 0:
        return jnp.concatenate([zeros, x[: C - s, :]], axis=0)
    return jnp.concatenate([x[-s:, :], zeros], axis=0)


def _cam_kernel(w_ref, x_ref, o_ref, *, k_size, channel_axis):
    # w_ref: (k_size,) f32 conv taps in SMEM; x_ref / o_ref: 2-D blocks in VMEM.
    xin = x_ref[...]
    x = xin.astype(jnp.float32)          # f32 conv/sigmoid math (v5e has no bf16 VPU/EUP)
    pad = (k_size - 1) // 2

    y = w_ref[pad] * x                   # center tap: no shift, no mask
    for t in range(k_size):              # tiny static unrolled loop over taps
        s = pad - t                      # logical shift for tap t (may be negative)
        if s == 0:
            continue                     # center tap already accumulated
        y = y + w_ref[t] * _channel_shift(x, s, channel_axis)

    # Sigmoid on the EUP; gate in the network dtype (bf16-native mul on v6e/v7x).
    o_ref[...] = (xin * jax.nn.sigmoid(y).astype(xin.dtype)).astype(o_ref.dtype)


def _choose_rows(n, unit_bytes, multiple, budget_bytes, min_split_bytes):
    """Rows per block along the gridded axis.

    Each block is rows * unit_bytes and is double-buffered for both input and
    output (~4x in VMEM).  Small payloads get a single block; large payloads get
    budget-sized blocks, capped so there are at least two grid tiles (both v7x
    TensorCores get work under dimension_semantics=("parallel",)).
    """
    total = n * unit_bytes
    if total <= min_split_bytes:
        return n                                                   # single DMA in/out
    rows = max(multiple, (budget_bytes // max(unit_bytes, 1)) // multiple * multiple)
    half = -(-n // 2)                                              # cdiv(n, 2)
    half = -(-half // multiple) * multiple                         # round up to multiple
    rows = min(rows, half)
    return max(1, min(rows, n))


@functools.partial(
    jax.jit,
    static_argnames=("k_size", "vmem_block_bytes", "min_split_bytes", "donate_x"),
)
def cam_forward(x, conv_weight, *, k_size=3,
                vmem_block_bytes=2 * 1024 * 1024,
                min_split_bytes=512 * 1024,
                donate_x=False):
    """CAM forward. x: (b, c, 1, 1) NCHW; conv_weight: (1, 1, k_size)."""
    assert k_size % 2 == 1, "CAM matches PyTorch Conv1d length only for odd k_size"
    b, c, h, w = x.shape
    assert h == 1 and w == 1, "CAM.forward requires h == w == 1 (Conv1d(1,1,k) + squeeze)"
    assert (k_size - 1) // 2 < c, "conv taps must fit inside the channel axis"

    itemsize = jnp.dtype(x.dtype).itemsize
    x2d = x.reshape(b, c)                         # keep the network dtype over HBM
    wk = conv_weight.reshape(k_size).astype(jnp.float32)

    # Layout selection: keep channels on lanes when c is lane-dense; otherwise,
    # if the batch is lane-dense, put the batch on lanes so stores are unmasked
    # full-lane vst (the conv then runs along sublanes).  In a fused network the
    # producer would emit this layout directly instead of the explicit transpose.
    transposed = (c % 128 != 0) and (b >= 128)

    if transposed:
        xk = x2d.T                                                           # (c, b)
        tb = _choose_rows(b, c * itemsize, 128, vmem_block_bytes, min_split_bytes)
        block = (c, tb)
        index_map = lambda i: (0, i)
        channel_axis = 0
    else:
        xk = x2d                                                             # (b, c)
        tb = _choose_rows(b, c * itemsize, 8, vmem_block_bytes, min_split_bytes)
        block = (tb, c)
        index_map = lambda i: (i, 0)
        channel_axis = 1

    grid = (pl.cdiv(b, tb),)

    out = pl.pallas_call(
        functools.partial(_cam_kernel, k_size=k_size, channel_axis=channel_axis),
        out_shape=jax.ShapeDtypeStruct(xk.shape, xk.dtype),
        grid=grid,
        in_specs=[
            pl.BlockSpec(memory_space=pltpu.MemorySpace.SMEM),   # conv taps (scalars)
            pl.BlockSpec(block, index_map),                      # x tile (VMEM)
        ],
        out_specs=pl.BlockSpec(block, index_map),
        input_output_aliases=({1: 0} if donate_x else {}),       # opt-in gate-in-place
        compiler_params=pltpu.CompilerParams(
            dimension_semantics=("parallel",),                   # batch grid across TCs
        ),
    )(wk, xk)

    out2d = out.T if transposed else out
    return out2d.reshape(b, c, 1, 1)


def cam_reference(x, conv_weight, k_size=3):
    """Pure-JAX reference of the PyTorch forward (for correctness check)."""
    b, c, h, w = x.shape
    x2d = x.reshape(b, c).astype(jnp.float32)
    pad = (k_size - 1) // 2
    xp = jnp.pad(x2d, ((0, 0), (pad, pad)))
    wk = conv_weight.reshape(k_size).astype(jnp.float32)
    y = sum(wk[t] * xp[:, t:t + c] for t in range(k_size))
    y = jax.nn.sigmoid(y)
    return (x2d * y).reshape(b, c, 1, 1).astype(x.dtype)


if __name__ == "__main__":
    key = jax.random.PRNGKey(0)
    kx, kw = jax.random.split(key)
    K = 3
    # Deterministic synthetic Conv1d(1, 1, 3, bias=False) weight.
    conv_w = 0.5 * jax.random.normal(kw, (1, 1, K), dtype=jnp.float32)

    # 1) Natural CAM shape: small batch, c not a multiple of 128 -> (b, c) layout,
    #    single block (no grid / pipeline overhead).
    x1 = jax.random.normal(kx, (4, 64, 1, 1), dtype=jnp.float32)
    o1 = jax.block_until_ready(cam_forward(x1, conv_w, k_size=K))
    assert o1.shape == x1.shape
    assert jnp.allclose(o1, cam_reference(x1, conv_w, K), atol=1e-5, rtol=1e-5)

    # 2) Lane-dense channels with a forced multi-tile batch grid (exercises the
    #    pipelined "parallel" megacore path at tiny shapes).
    x2 = jax.random.normal(kx, (32, 256, 1, 1), dtype=jnp.float32)
    o2 = jax.block_until_ready(
        cam_forward(x2, conv_w, k_size=K,
                    vmem_block_bytes=8 * 256 * 4, min_split_bytes=0))
    assert jnp.allclose(o2, cam_reference(x2, conv_w, K), atol=1e-5, rtol=1e-5)

    # 3) c % 128 != 0 with a lane-dense batch -> transposed (c, b) layout, 2 tiles.
    x3 = jax.random.normal(kx, (256, 48, 1, 1), dtype=jnp.float32)
    o3 = jax.block_until_ready(
        cam_forward(x3, conv_w, k_size=K,
                    vmem_block_bytes=128 * 48 * 4, min_split_bytes=0))
    assert jnp.allclose(o3, cam_reference(x3, conv_w, K), atol=1e-5, rtol=1e-5)

    print("KERNEL_OK")
</pallas_src>

<mosaic_0001>
module attributes {stable_mosaic.version = 11 : i64} {
  func.func @_cam_kernel(%arg0: i32, %arg1: memref<3xf32, #tpu.memory_space<smem>>, %arg2: memref<4x64xf32, #tpu.memory_space<vmem>>, %arg3: memref<4x64xf32, #tpu.memory_space<vmem>>) attributes {dimension_semantics = [#tpu.dimension_semantics<parallel>], iteration_bounds = array<i64: 1>, scalar_prefetch = 0 : i64, scratch_operands = 0 : i64, tpu.core_type = #tpu.core_type<tc>, window_params = [{transform_indices = @transform_0, window_bounds = array<i64: 3>}, {transform_indices = @transform_1, window_bounds = array<i64: 4, 64>}, {transform_indices = @transform_2, window_bounds = array<i64: 4, 64>}]} {
    %c0 = arith.constant 0 : index
    %c0_0 = arith.constant 0 : index
    %0 = vector.load %arg2[%c0, %c0_0] : memref<4x64xf32, #tpu.memory_space<vmem>>, vector<4x64xf32>
    %c1 = arith.constant 1 : index
    %1 = memref.load %arg1[%c1] : memref<3xf32, #tpu.memory_space<smem>>
    %2 = vector.broadcast %1 : f32 to vector<4x64xf32>
    %3 = arith.mulf %2, %0 : vector<4x64xf32>
    %c0_1 = arith.constant 0 : index
    %4 = memref.load %arg1[%c0_1] : memref<3xf32, #tpu.memory_space<smem>>
    %5 = tpu.iota {dimensions = array<i32: 1>} : vector<1x64xi32>
    %c1_i32 = arith.constant 1 : i32
    %6 = tpu.dynamic_rotate %0 by %c1_i32 dim 1 : vector<4x64xf32>, i32 -> vector<4x64xf32>
    %c1_i32_2 = arith.constant 1 : i32
    %7 = vector.broadcast %c1_i32_2 : i32 to vector<1x64xi32>
    %8 = arith.cmpi sge, %5, %7 : vector<1x64xi32>
    %cst = arith.constant 0.000000e+00 : f32
    %9 = vector.shape_cast %8 : vector<1x64xi1> to vector<1x64xi1>
    %10 = vector.broadcast %9 : vector<1x64xi1> to vector<4x64xi1>
    %11 = vector.broadcast %cst : f32 to vector<4x64xf32>
    %12 = arith.select %10, %6, %11 : vector<4x64xi1>, vector<4x64xf32>
    %13 = vector.broadcast %4 : f32 to vector<4x64xf32>
    %14 = arith.mulf %13, %12 : vector<4x64xf32>
    %15 = arith.addf %3, %14 : vector<4x64xf32>
    %c2 = arith.constant 2 : index
    %16 = memref.load %arg1[%c2] : memref<3xf32, #tpu.memory_space<smem>>
    %17 = tpu.iota {dimensions = array<i32: 1>} : vector<1x64xi32>
    %c63_i32 = arith.constant 63 : i32
    %18 = tpu.dynamic_rotate %0 by %c63_i32 dim 1 : vector<4x64xf32>, i32 -> vector<4x64xf32>
    %c63_i32_3 = arith.constant 63 : i32
    %19 = vector.broadcast %c63_i32_3 : i32 to vector<1x64xi32>
    %20 = arith.cmpi slt, %17, %19 : vector<1x64xi32>
    %cst_4 = arith.constant 0.000000e+00 : f32
    %21 = vector.shape_cast %20 : vector<1x64xi1> to vector<1x64xi1>
    %22 = vector.broadcast %21 : vector<1x64xi1> to vector<4x64xi1>
    %23 = vector.broadcast %cst_4 : f32 to vector<4x64xf32>
    %24 = arith.select %22, %18, %23 : vector<4x64xi1>, vector<4x64xf32>
    %25 = vector.broadcast %16 : f32 to vector<4x64xf32>
    %26 = arith.mulf %25, %24 : vector<4x64xf32>
    %27 = arith.addf %15, %26 : vector<4x64xf32>
    %28 = arith.negf %27 : vector<4x64xf32>
    %29 = math.exp %28 : vector<4x64xf32>
    %cst_5 = arith.constant 1.000000e+00 : f32
    %30 = vector.broadcast %cst_5 : f32 to vector<4x64xf32>
    %31 = arith.addf %30, %29 : vector<4x64xf32>
    %32 = arith.divf %30, %31 : vector<4x64xf32>
    %33 = arith.mulf %0, %32 : vector<4x64xf32>
    %c0_6 = arith.constant 0 : index
    %c0_7 = arith.constant 0 : index
    %34 = vector.load %arg3[%c0_6, %c0_7] : memref<4x64xf32, #tpu.memory_space<vmem>>, vector<4x64xf32>
    tpu.vector_store %arg3[%c0_6, %c0_7], %33 {strides = array<i32>} : memref<4x64xf32, #tpu.memory_space<vmem>>, vector<4x64xf32>,
    return
  }
  func.func @transform_0(%arg0: i32) -> i32 {
    %c0_i32 = arith.constant 0 : i32
    %c0_i32_0 = arith.constant 0 : i32
    return %c0_i32 : i32
  }
  func.func @transform_1(%arg0: i32) -> (i32, i32) {
    %c0_i32 = arith.constant 0 : i32
    %c0_i32_0 = arith.constant 0 : i32
    return %arg0, %c0_i32 : i32, i32
  }
  func.func @transform_2(%arg0: i32) -> (i32, i32) {
    %c0_i32 = arith.constant 0 : i32
    %c0_i32_0 = arith.constant 0 : i32
    return %arg0, %c0_i32 : i32, i32
  }
}

</mosaic_0001>

<llo_original>
// kernel: cam_forward.1
$region0: #{cam_forward.1}
  #allocation0 [shape = 'u32[]', space=smem, size = 0x4, offset = 0x4, fixed_abs, tag = 'smem constant byte address 0x4 - core index']
  #allocation1 [shape = 'u32[144,128]{1,0:T(1,128)}', space=vmem, size = 0x12000, scoped, tag = 'internal scratch']
  %s0 = inlined_call_operand.vmem [shape: f32[3], index: 0, kind: input, shape index: {}]
  %s1 = inlined_call_operand.hbm [shape: f32[4,64], index: 1, kind: input, shape index: {}]
  %s2 = inlined_call_operand.hbm [shape: f32[4,64], index: 2, kind: output, shape index: {}]
  %s3 = sld [smem:[#allocation0]]
  $region26: #{cam_forward.1} parent=0
    _
  %s5 = ssub.s32 1, %s3
  %s6 = scalar_select 0, %s5, %s3
  $region1: #{cam_forward.1} parent=0
    #allocation2 [shape = 'u8[512]{0}', space=smem, size = 0x200, scoped, tag = 'input window, operand 0, single buffered']
    #allocation3 [shape = 's32[1]{0}', space=sflag, size = 0x4, scoped, tag = 'scoped memory for cam_forward.1']
    #allocation4 [shape = 's32[1]{0}', space=sflag, size = 0x4, scoped, tag = 'scoped memory for cam_forward.1']
    #allocation5 [shape = 's32[1]{0}', space=sflag, size = 0x4, scoped, tag = 'scoped memory for cam_forward.1']
    #allocation6 [shape = 'u8[2048]{0}', space=vmem, size = 0x800, scoped, tag = 'input window, operand 1, single buffered']
    #allocation7 [shape = 'u8[2048]{0}', space=vmem, size = 0x800, scoped, tag = 'output window, operand 0, single buffered']
    %7 = vsyncpa [#allocation5], 0
    %8 = vsyncpa [#allocation3], 0
    %9 = vsyncpa [#allocation4], 0
    // Predicated region
    $region2: #{cam_forward.1} parent=1 // pred_check
      _
    $region3: #{cam_forward.1} parent=1 // pred_check_branch
      %11 = sbr.rel (0) target = $region5
    $region4: #{cam_forward.1} parent=1 // pred_region
      %s13 = ssub.s32 16, 16
      %14 = vsyncadd [#allocation5], %s13
      %s16 = sshll.u32 %s0, 4
      %s17 = int_to_ptr.vmem [resolvable:$true] %s16
      %19 = dma.vmem_to_smem %s17, 16, [#allocation2], [#allocation5]
    $region5: #{cam_forward.1} parent=1 // pred_fallthru
      _
    // Predicated region
    $region6: #{cam_forward.1} parent=1 // pred_check
      _
    $region7: #{cam_forward.1} parent=1 // pred_check_branch
      %21 = sbr.rel (0) target = $region9
    $region8: #{cam_forward.1} parent=1 // pred_region
      %s23 = ssub.s32 64, 64
      %24 = vsyncadd [#allocation3], %s23
      %s26 = sshll.u32 [#allocation6], 4
      %s27 = int_to_ptr.vmem [resolvable:$true] %s26
      %29 = dma.hbm_to_vmem [thread:$0]  %s1, 64, %s27, [#allocation3]
    $region9: #{cam_forward.1} parent=1 // pred_fallthru
      _
    // Predicated region
    $region10: #{cam_forward.1} parent=1 // pred_check
      _
    $region11: #{cam_forward.1} parent=1 // pred_check_branch
      %31 = sbr.rel (0) target = $region13
    $region12: #{cam_forward.1} parent=1 // pred_region
      %32 = dma.done [#allocation5], 16
    $region13: #{cam_forward.1} parent=1 // pred_fallthru
      _
    // Predicated region
    $region14: #{cam_forward.1} parent=1 // pred_check
      _
    $region15: #{cam_forward.1} parent=1 // pred_check_branch
      %34 = sbr.rel (0) target = $region17
    $region16: #{cam_forward.1} parent=1 // pred_region
      %35 = dma.done [#allocation3], 64
    $region17: #{cam_forward.1} parent=1 // pred_fallthru
      _
    %36 = sfence
    %v37 = vld [vmem:[#allocation6] sm:$0xf]
    %s38 = sld [smem:[#allocation2 + $0x1]]
    %v39 = vstv %s38
    %v40 = vmul.f32 %v39, %v37
    %s41 = sld [smem:[#allocation2]]
    %v42 = vlaneseq
    %v43 = vand.u32 %v42, 127
    %vm44 = vcmask 1048064
    %45 = vrot.lane.b32.xlu0 %v37, 64
    %v46 = vpop.permute.xlu0 %45
    %v47 = vsel %vm44, %v46, %v37
    %48 = vrot.lane.b32.xlu0 %v47, 64
    %v49 = vpop.permute.xlu0 %48
    %v50 = vsel %vm44, %v49, %v37
    %vm51 = vcmp.ge.s32.totalorder %v43, 1
    %v52 = vsel %vm51, 1, 0
    %vm53 = vcmp.eq.s32.totalorder %v52, 1
    %55 = vrot.lane.b32.xlu0 %v50, 65
    %v56 = vpop.permute.xlu0 %55
    %v58 = vsel %vm53, %v56, 0.0
    %v59 = vstv %s41
    %v60 = vmul.f32 %v59, %v58
    %v61 = vadd.f32 %v40, %v60
    %s62 = sld [smem:[#allocation2 + $0x2]]
    %vm63 = vcmp.lt.s32.totalorder %v43, 63
    %v64 = vsel %vm63, 1, 0
    %vm65 = vcmp.eq.s32.totalorder %v64, 1
    %66 = vrot.lane.b32.xlu0 %v50, 127
    %v67 = vpop.permute.xlu0 %66
    %v69 = vsel %vm65, %v67, 0.0
    %v70 = vstv %s62
    %v71 = vmul.f32 %v70, %v69
    %v72 = vadd.f32 %v61, %v71
    %v73 = vxor.u32 %v72, 2147483648
    %v74 = vmul.f32 %v73, 1.442695
    %v75 = vpow.pop %v74
    %v76 = vadd.f32 %v75, 1.0
    %v77 = vrcp.pop %v76
    %v78 = vmul.f32 1.0, %v77
    %v79 = vmul.f32 %v37, %v78
    %vm80 = vcmask 519168
    %81 = vst.msk [vmem:[#allocation7] sm:$0xf] %vm80, %v79
    // Predicated region
    $region18: #{cam_forward.1} parent=1 // pred_check
      _
    $region19: #{cam_forward.1} parent=1 // pred_check_branch
      %83 = sbr.rel (0) target = $region21
    $region20: #{cam_forward.1} parent=1 // pred_region
      %s85 = ssub.s32 64, 64
      %86 = vsyncadd [#allocation4], %s85
      %s88 = sshll.u32 [#allocation7], 4
      %s89 = int_to_ptr.vmem [resolvable:$true] %s88
      %91 = dma.vmem_to_hbm [thread:$0]  %s89, 64, %s2, [#allocation4]
    $region21: #{cam_forward.1} parent=1 // pred_fallthru
      _
    // Predicated region
    $region22: #{cam_forward.1} parent=1 // pred_check
      _
    $region23: #{cam_forward.1} parent=1 // pred_check_branch
      %93 = sbr.rel (0) target = $region25
    $region24: #{cam_forward.1} parent=1 // pred_region
      %94 = dma.done [#allocation4], 64
    $region25: #{cam_forward.1} parent=1 // pred_fallthru
      _
    %95 = vsyncpa [#allocation3], 1
    %96 = vsyncpa [#allocation4], 1
    %97 = vsyncpa [#allocation5], 1

</llo_original>
